<compile_context>
chip_gen: v7x
topology: tpu7x:2x2x1
jax: 0.10.0
libtpu: 0.0.40
codegen_flags: <defaults>
</compile_context>

<pallas_src>
import jax
import jax.numpy as jnp
from jax.experimental import pallas as pl
from jax.experimental.pallas import tpu as pltpu

# ----------------------------- configuration --------------------------------
B, C, H, W = 2, 4, 16, 16          # input image batch (NCHW, PyTorch convention)
KSIZE = 3                          # synthetic backbone conv kernel
PATCH = KSIZE * KSIZE * C          # im2col columns = 36
FEATURE_DIM = 32                   # backbone output feature dim
META_DIM = 8                       # meta_feature_dim
HIDDEN = 4096                      # nn.Linear(feature_dim + meta_dim, 4096)
NUM_CLASSES = 8
BN_EPS = 1e-5
HIGH = jax.lax.Precision.HIGHEST


# ------------------------------ Pallas kernel --------------------------------
def fused_kernel(xcol_ref, meta_ref, wconv_ref, bconv_ref,
                 wres_ref, wmeta_ref, bout_ref, out_ref):
    """Entire MetaModel forward in one kernel.

    xcol_ref : (B*H*W, 9*C)        lane-dense im2col matrix (built by the XLA wrapper)
    meta_ref : (B, META_DIM)
    wconv_ref: (9*C, FEATURE_DIM)  conv taps flattened to a single 2D matrix
    bconv_ref: (1, FEATURE_DIM)
    wres_ref : (FEATURE_DIM, NUM_CLASSES)  folded midd@head (res slice)
    wmeta_ref: (META_DIM, NUM_CLASSES)     folded BN+midd@head (meta slice)
    bout_ref : (1, NUM_CLASSES)            folded bias
    out_ref  : (B, NUM_CLASSES)
    """
    # --- 3x3 'same' conv as ONE K=36 MXU matmul (no per-tap slicing / accumulation) ---
    y = jnp.dot(xcol_ref[...], wconv_ref[...],
                preferred_element_type=jnp.float32)            # (B*HW, F)
    y = jnp.maximum(y + bconv_ref[...], 0.0)                   # bias + ReLU

    # --- global average pool: sublane regroup + cross-sublane reduce (XLU, no MXU) ---
    res = jnp.sum(y.reshape(B, H * W, FEATURE_DIM), axis=1) * (1.0 / (H * W))  # (B, F)
    # dropout(p=0.67): identity in eval mode

    # --- midd (BN folded) + head folded offline into one (40 -> NUM_CLASSES) linear ---
    # (weight split along the input dim so no in-kernel concat of [res, meta] is needed)
    out = (jnp.dot(res, wres_ref[...], preferred_element_type=jnp.float32)
           + jnp.dot(meta_ref[...], wmeta_ref[...], preferred_element_type=jnp.float32)
           + bout_ref[...])                                    # (B, NUM_CLASSES)
    # NOTE: last dim 8 -> masked stores; negligible at this size.
    out_ref[...] = out.astype(out_ref.dtype)


# ------------------------------ glue / wrapper -------------------------------
def init_params(key):
    """Synthetic parameters in their 'PyTorch-like' (unfolded, f32) form."""
    ks = jax.random.split(key, 10)
    return {
        # synthetic backbone conv stem: (9, C, F), tap k = di*3+dj
        "wconv": jax.random.normal(ks[0], (KSIZE * KSIZE, C, FEATURE_DIM), jnp.float32) * 0.1,
        "bconv": jax.random.normal(ks[1], (1, FEATURE_DIM), jnp.float32) * 0.01,
        # BatchNorm1d(meta_feature_dim) — eval-mode running stats
        "bn_gamma": 1.0 + 0.1 * jax.random.normal(ks[2], (1, META_DIM), jnp.float32),
        "bn_beta": 0.1 * jax.random.normal(ks[3], (1, META_DIM), jnp.float32),
        "bn_mean": 0.05 * jax.random.normal(ks[4], (1, META_DIM), jnp.float32),
        "bn_var": jnp.abs(1.0 + 0.1 * jax.random.normal(ks[5], (1, META_DIM), jnp.float32)),
        # midd: Linear(feature_dim + meta_dim, 4096), stored (in, out), split along in
        "w1_res": jax.random.normal(ks[6], (FEATURE_DIM, HIDDEN), jnp.float32) * 0.02,
        "w1_meta": jax.random.normal(ks[7], (META_DIM, HIDDEN), jnp.float32) * 0.02,
        "b1": jnp.zeros((1, HIDDEN), jnp.float32),
        # head: Linear(4096, num_classes), PyTorch-style (out, in)
        "w2": jax.random.normal(ks[8], (NUM_CLASSES, HIDDEN), jnp.float32) * 0.02,
        "b2": jnp.zeros((1, NUM_CLASSES), jnp.float32),
    }


def prepare_kernel_params(params):
    """One-time parameter prep (outside the kernel / jit of the forward):
    1) fold eval-mode BN into the meta slice of Linear #1,
    2) fold Linear #1 @ Linear #2 (no activation in between in the PyTorch model)
       into a single (40 -> NUM_CLASSES) linear map, computed in f32 at HIGHEST precision,
    3) flatten the conv taps into one (9*C, F) matrix for the im2col matmul."""
    a = params["bn_gamma"] * jax.lax.rsqrt(params["bn_var"] + BN_EPS)   # (1, META_DIM)
    bshift = params["bn_beta"] - params["bn_mean"] * a                  # (1, META_DIM)
    w1_meta_folded = a.reshape(META_DIM, 1) * params["w1_meta"]         # (META_DIM, HIDDEN)
    b1_folded = params["b1"] + jnp.dot(bshift, params["w1_meta"], precision=HIGH)

    w2t = params["w2"].T                                                # (HIDDEN, NUM_CLASSES)
    w_res_fold = jnp.dot(params["w1_res"], w2t, precision=HIGH)         # (F, NUM_CLASSES)
    w_meta_fold = jnp.dot(w1_meta_folded, w2t, precision=HIGH)          # (META_DIM, NUM_CLASSES)
    b_fold = jnp.dot(b1_folded, w2t, precision=HIGH) + params["b2"]     # (1, NUM_CLASSES)

    return {
        "wconv2d": params["wconv"].reshape(PATCH, FEATURE_DIM),
        "bconv": params["bconv"],
        "w_res_fold": w_res_fold,
        "w_meta_fold": w_meta_fold,
        "b_fold": b_fold,
    }


@jax.jit
def meta_model_forward(x, meta_feature, kparams):
    # XLA-side prep: NCHW -> NHWC, 1-px zero pad, and im2col to a lane-dense
    # (B*H*W, 9*C) matrix (72 KB) so the kernel sees a single clean 2D matmul operand.
    xh = jnp.transpose(x, (0, 2, 3, 1))                        # (B, H, W, C)
    xp = jnp.pad(xh, ((0, 0), (1, 1), (1, 1), (0, 0)))         # (B, H+2, W+2, C)
    cols = [xp[:, di:di + H, dj:dj + W, :]
            for di in range(KSIZE) for dj in range(KSIZE)]     # 9 x (B, H, W, C)
    xcol = jnp.concatenate(cols, axis=-1).reshape(B * H * W, PATCH)   # (512, 36)

    args = (xcol, meta_feature,
            kparams["wconv2d"], kparams["bconv"],
            kparams["w_res_fold"], kparams["w_meta_fold"], kparams["b_fold"])

    return pl.pallas_call(
        fused_kernel,
        out_shape=jax.ShapeDtypeStruct((B, NUM_CLASSES), jnp.float32),
        # single invocation (no grid, no pipelining): every operand fully resident in VMEM
        in_specs=[pl.BlockSpec(memory_space=pltpu.MemorySpace.VMEM)] * len(args),
        out_specs=pl.BlockSpec(memory_space=pltpu.MemorySpace.VMEM),
    )(*args)


def reference_forward(x, meta_feature, params):
    """Pure-JAX reference of the same eval-mode forward (unfolded params, f32)."""
    xh = jnp.transpose(x, (0, 2, 3, 1))
    w_hwio = params["wconv"].reshape(KSIZE, KSIZE, C, FEATURE_DIM)
    y = jax.lax.conv_general_dilated(
        xh, w_hwio, window_strides=(1, 1), padding="SAME",
        dimension_numbers=("NHWC", "HWIO", "NHWC"), precision=HIGH)
    y = jnp.maximum(y + params["bconv"].reshape(1, 1, 1, FEATURE_DIM), 0.0)
    res = jnp.mean(y, axis=(1, 2))                             # (B, F)
    meta_n = (meta_feature - params["bn_mean"]) * jax.lax.rsqrt(params["bn_var"] + BN_EPS)
    meta_n = meta_n * params["bn_gamma"] + params["bn_beta"]
    w1 = jnp.concatenate([params["w1_res"], params["w1_meta"]], axis=0)
    h = jnp.dot(jnp.concatenate([res, meta_n], axis=-1), w1, precision=HIGH) + params["b1"]
    return jnp.dot(h, params["w2"].T, precision=HIGH) + params["b2"]


if __name__ == "__main__":
    key = jax.random.PRNGKey(0)
    kx, km = jax.random.split(key, 2)

    x = jax.random.normal(kx, (B, C, H, W), jnp.float32)          # NCHW, like PyTorch
    meta_feature = jax.random.normal(km, (B, META_DIM), jnp.float32)

    params = init_params(jax.random.PRNGKey(42))
    kparams = prepare_kernel_params(params)

    out = meta_model_forward(x, meta_feature, kparams)
    out = jax.block_until_ready(out)
    assert out.shape == (B, NUM_CLASSES)

    ref = reference_forward(x, meta_feature, params)
    # f32 end-to-end now; tolerance only needs to cover reassociation of the offline
    # 4096-wide fold vs. the reference's explicit two-layer computation.
    assert jnp.allclose(out, ref, rtol=5e-3, atol=5e-3), "mismatch vs pure-JAX reference"

    print("KERNEL_OK")
</pallas_src>

<mosaic_0001>
module attributes {stable_mosaic.version = 11 : i64} {
  func.func @fused_kernel(%arg0: memref<512x36xf32, #tpu.memory_space<vmem>>, %arg1: memref<2x8xf32, #tpu.memory_space<vmem>>, %arg2: memref<36x32xf32, #tpu.memory_space<vmem>>, %arg3: memref<1x32xf32, #tpu.memory_space<vmem>>, %arg4: memref<32x8xf32, #tpu.memory_space<vmem>>, %arg5: memref<8x8xf32, #tpu.memory_space<vmem>>, %arg6: memref<1x8xf32, #tpu.memory_space<vmem>>, %arg7: memref<2x8xf32, #tpu.memory_space<vmem>>) attributes {dimension_semantics = [], scalar_prefetch = 0 : i64, scratch_operands = 0 : i64, tpu.core_type = #tpu.core_type<tc>} {
    %c0 = arith.constant 0 : index
    %c0_0 = arith.constant 0 : index
    %0 = vector.load %arg0[%c0, %c0_0] : memref<512x36xf32, #tpu.memory_space<vmem>>, vector<512x36xf32>
    %c0_1 = arith.constant 0 : index
    %c0_2 = arith.constant 0 : index
    %1 = vector.load %arg2[%c0_1, %c0_2] : memref<36x32xf32, #tpu.memory_space<vmem>>, vector<36x32xf32>
    %cst = arith.constant dense<0.000000e+00> : vector<512x32xf32>
    %2 = tpu.matmul %0, %1, %cst {dimension_numbers = #tpu.dot_dimension_numbers<[1], [0], [0], [1], [0, 0, 1, 1], [], []>} : vector<512x36xf32>, vector<36x32xf32>, vector<512x32xf32> -> vector<512x32xf32>
    %c0_3 = arith.constant 0 : index
    %c0_4 = arith.constant 0 : index
    %3 = vector.load %arg3[%c0_3, %c0_4] : memref<1x32xf32, #tpu.memory_space<vmem>>, vector<1x32xf32>
    %4 = vector.broadcast %3 : vector<1x32xf32> to vector<512x32xf32>
    %5 = arith.addf %2, %4 : vector<512x32xf32>
    %cst_5 = arith.constant 0.000000e+00 : f32
    %6 = vector.broadcast %cst_5 : f32 to vector<512x32xf32>
    %7 = arith.maximumf %5, %6 : vector<512x32xf32>
    %8 = vector.shape_cast %7 : vector<512x32xf32> to vector<2x256x32xf32>
    %cst_6 = arith.constant dense<0.000000e+00> : vector<2x32xf32>
    %9 = vector.multi_reduction <add>, %8, %cst_6 [1] : vector<2x256x32xf32> to vector<2x32xf32>
    %cst_7 = arith.constant 3.906250e-03 : f32
    %10 = vector.broadcast %cst_7 : f32 to vector<2x32xf32>
    %11 = arith.mulf %9, %10 : vector<2x32xf32>
    %c0_8 = arith.constant 0 : index
    %c0_9 = arith.constant 0 : index
    %12 = vector.load %arg4[%c0_8, %c0_9] : memref<32x8xf32, #tpu.memory_space<vmem>>, vector<32x8xf32>
    %cst_10 = arith.constant dense<0.000000e+00> : vector<2x8xf32>
    %13 = tpu.matmul %11, %12, %cst_10 {dimension_numbers = #tpu.dot_dimension_numbers<[1], [0], [0], [1], [0, 0, 1, 1], [], []>} : vector<2x32xf32>, vector<32x8xf32>, vector<2x8xf32> -> vector<2x8xf32>
    %c0_11 = arith.constant 0 : index
    %c0_12 = arith.constant 0 : index
    %14 = vector.load %arg1[%c0_11, %c0_12] : memref<2x8xf32, #tpu.memory_space<vmem>>, vector<2x8xf32>
    %c0_13 = arith.constant 0 : index
    %c0_14 = arith.constant 0 : index
    %15 = vector.load %arg5[%c0_13, %c0_14] : memref<8x8xf32, #tpu.memory_space<vmem>>, vector<8x8xf32>
    %cst_15 = arith.constant dense<0.000000e+00> : vector<2x8xf32>
    %16 = tpu.matmul %14, %15, %cst_15 {dimension_numbers = #tpu.dot_dimension_numbers<[1], [0], [0], [1], [0, 0, 1, 1], [], []>} : vector<2x8xf32>, vector<8x8xf32>, vector<2x8xf32> -> vector<2x8xf32>
    %17 = arith.addf %13, %16 : vector<2x8xf32>
    %c0_16 = arith.constant 0 : index
    %c0_17 = arith.constant 0 : index
    %18 = vector.load %arg6[%c0_16, %c0_17] : memref<1x8xf32, #tpu.memory_space<vmem>>, vector<1x8xf32>
    %19 = vector.broadcast %18 : vector<1x8xf32> to vector<2x8xf32>
    %20 = arith.addf %17, %19 : vector<2x8xf32>
    %c0_18 = arith.constant 0 : index
    %c0_19 = arith.constant 0 : index
    %21 = vector.load %arg7[%c0_18, %c0_19] : memref<2x8xf32, #tpu.memory_space<vmem>>, vector<2x8xf32>
    tpu.vector_store %arg7[%c0_18, %c0_19], %20 {strides = array<i32>} : memref<2x8xf32, #tpu.memory_space<vmem>>, vector<2x8xf32>,
    return
  }
}

</mosaic_0001>

<llo_original>
// kernel: meta_model_forward.1
$region0: #{meta_model_forward.1}
  #allocation0 [shape = 'u32[]', space=smem, size = 0x4, offset = 0x4, fixed_abs, tag = 'smem constant byte address 0x4 - core index']
  #allocation1 [shape = 'u32[144,128]{1,0:T(1,128)}', space=vmem, size = 0x12000, scoped, tag = 'internal scratch']
  %s0 = inlined_call_operand.vmem [shape: f32[512,36], index: 0, kind: input, shape index: {}]
  %s1 = inlined_call_operand.vmem [shape: f32[2,8], index: 1, kind: input, shape index: {}]
  %s2 = inlined_call_operand.vmem [shape: f32[36,32], index: 2, kind: input, shape index: {}]
  %s3 = inlined_call_operand.vmem [shape: f32[1,32], index: 3, kind: input, shape index: {}]
  %s4 = inlined_call_operand.vmem [shape: f32[32,8], index: 4, kind: input, shape index: {}]
  %s5 = inlined_call_operand.vmem [shape: f32[8,8], index: 5, kind: input, shape index: {}]
  %s6 = inlined_call_operand.vmem [shape: f32[1,8], index: 6, kind: input, shape index: {}]
  %s7 = inlined_call_operand.hbm [shape: f32[2,8], index: 7, kind: output, shape index: {}]
  %s8 = sld [smem:[#allocation0]]
  $region38: #{meta_model_forward.1} parent=0
    _
  %s10 = ssub.s32 1, %s8
  %s11 = scalar_select 0, %s10, %s8
  $region1: #{meta_model_forward.1} parent=0
    #allocation2 [shape = 'u8[1024]{0}', space=vmem, size = 0x400, scoped, tag = 'output window, operand 0, single buffered']
    #allocation3 [shape = 's32[1]{0}', space=sflag, size = 0x4, scoped, tag = 'scoped memory for meta_model_forward.1']
    %12 = vsyncpa [#allocation3], 0
    // Predicated region
    $region2: #{meta_model_forward.1} parent=1 // pred_check
      _
    $region3: #{meta_model_forward.1} parent=1 // pred_check_branch
      %14 = sbr.rel (0) target = $region5
    $region4: #{meta_model_forward.1} parent=1 // pred_region
      _
    $region5: #{meta_model_forward.1} parent=1 // pred_fallthru
      _
    // Predicated region
    $region6: #{meta_model_forward.1} parent=1 // pred_check
      _
    $region7: #{meta_model_forward.1} parent=1 // pred_check_branch
      %16 = sbr.rel (0) target = $region9
    $region8: #{meta_model_forward.1} parent=1 // pred_region
      _
    $region9: #{meta_model_forward.1} parent=1 // pred_fallthru
      _
    // Predicated region
    $region10: #{meta_model_forward.1} parent=1 // pred_check
      _
    $region11: #{meta_model_forward.1} parent=1 // pred_check_branch
      %18 = sbr.rel (0) target = $region13
    $region12: #{meta_model_forward.1} parent=1 // pred_region
      _
    $region13: #{meta_model_forward.1} parent=1 // pred_fallthru
      _
    // Predicated region
    $region14: #{meta_model_forward.1} parent=1 // pred_check
      _
    $region15: #{meta_model_forward.1} parent=1 // pred_check_branch
      %20 = sbr.rel (0) target = $region17
    $region16: #{meta_model_forward.1} parent=1 // pred_region
      _
    $region17: #{meta_model_forward.1} parent=1 // pred_fallthru
      _
    // Predicated region
    $region18: #{meta_model_forward.1} parent=1 // pred_check
      _
    $region19: #{meta_model_forward.1} parent=1 // pred_check_branch
      %22 = sbr.rel (0) target = $region21
    $region20: #{meta_model_forward.1} parent=1 // pred_region
      _
    $region21: #{meta_model_forward.1} parent=1 // pred_fallthru
      _
    // Predicated region
    $region22: #{meta_model_forward.1} parent=1 // pred_check
      _
    $region23: #{meta_model_forward.1} parent=1 // pred_check_branch
      %24 = sbr.rel (0) target = $region25
    $region24: #{meta_model_forward.1} parent=1 // pred_region
      _
    $region25: #{meta_model_forward.1} parent=1 // pred_fallthru
      _
    // Predicated region
    $region26: #{meta_model_forward.1} parent=1 // pred_check
      _
    $region27: #{meta_model_forward.1} parent=1 // pred_check_branch
      %26 = sbr.rel (0) target = $region29
    $region28: #{meta_model_forward.1} parent=1 // pred_region
      _
    $region29: #{meta_model_forward.1} parent=1 // pred_fallthru
      _
    %v27 = vld [vmem:[%s0] sm:$0xff]
    %v28 = vld [vmem:[%s0 + $0x8] sm:$0xff]
    %v29 = vld [vmem:[%s0 + $0x10] sm:$0xff]
    %v30 = vld [vmem:[%s0 + $0x18] sm:$0xff]
    %v31 = vld [vmem:[%s0 + $0x20] sm:$0xff]
    %v32 = vld [vmem:[%s0 + $0x28] sm:$0xff]
    %v33 = vld [vmem:[%s0 + $0x30] sm:$0xff]
    %v34 = vld [vmem:[%s0 + $0x38] sm:$0xff]
    %v35 = vld [vmem:[%s0 + $0x40] sm:$0xff]
    %v36 = vld [vmem:[%s0 + $0x48] sm:$0xff]
    %v37 = vld [vmem:[%s0 + $0x50] sm:$0xff]
    %v38 = vld [vmem:[%s0 + $0x58] sm:$0xff]
    %v39 = vld [vmem:[%s0 + $0x60] sm:$0xff]
    %v40 = vld [vmem:[%s0 + $0x68] sm:$0xff]
    %v41 = vld [vmem:[%s0 + $0x70] sm:$0xff]
    %v42 = vld [vmem:[%s0 + $0x78] sm:$0xff]
    %v43 = vld [vmem:[%s0 + $0x80] sm:$0xff]
    %v44 = vld [vmem:[%s0 + $0x88] sm:$0xff]
    %v45 = vld [vmem:[%s0 + $0x90] sm:$0xff]
    %v46 = vld [vmem:[%s0 + $0x98] sm:$0xff]
    %v47 = vld [vmem:[%s0 + $0xa0] sm:$0xff]
    %v48 = vld [vmem:[%s0 + $0xa8] sm:$0xff]
    %v49 = vld [vmem:[%s0 + $0xb0] sm:$0xff]
    %v50 = vld [vmem:[%s0 + $0xb8] sm:$0xff]
    %v51 = vld [vmem:[%s0 + $0xc0] sm:$0xff]
    %v52 = vld [vmem:[%s0 + $0xc8] sm:$0xff]
    %v53 = vld [vmem:[%s0 + $0xd0] sm:$0xff]
    %v54 = vld [vmem:[%s0 + $0xd8] sm:$0xff]
    %v55 = vld [vmem:[%s0 + $0xe0] sm:$0xff]
    %v56 = vld [vmem:[%s0 + $0xe8] sm:$0xff]
    %v57 = vld [vmem:[%s0 + $0xf0] sm:$0xff]
    %v58 = vld [vmem:[%s0 + $0xf8] sm:$0xff]
    %v59 = vld [vmem:[%s0 + $0x100] sm:$0xff]
    %v60 = vld [vmem:[%s0 + $0x108] sm:$0xff]
    %v61 = vld [vmem:[%s0 + $0x110] sm:$0xff]
    %v62 = vld [vmem:[%s0 + $0x118] sm:$0xff]
    %v63 = vld [vmem:[%s0 + $0x120] sm:$0xff]
    %v64 = vld [vmem:[%s0 + $0x128] sm:$0xff]
    %v65 = vld [vmem:[%s0 + $0x130] sm:$0xff]
    %v66 = vld [vmem:[%s0 + $0x138] sm:$0xff]
    %v67 = vld [vmem:[%s0 + $0x140] sm:$0xff]
    %v68 = vld [vmem:[%s0 + $0x148] sm:$0xff]
    %v69 = vld [vmem:[%s0 + $0x150] sm:$0xff]
    %v70 = vld [vmem:[%s0 + $0x158] sm:$0xff]
    %v71 = vld [vmem:[%s0 + $0x160] sm:$0xff]
    %v72 = vld [vmem:[%s0 + $0x168] sm:$0xff]
    %v73 = vld [vmem:[%s0 + $0x170] sm:$0xff]
    %v74 = vld [vmem:[%s0 + $0x178] sm:$0xff]
    %v75 = vld [vmem:[%s0 + $0x180] sm:$0xff]
    %v76 = vld [vmem:[%s0 + $0x188] sm:$0xff]
    %v77 = vld [vmem:[%s0 + $0x190] sm:$0xff]
    %v78 = vld [vmem:[%s0 + $0x198] sm:$0xff]
    %v79 = vld [vmem:[%s0 + $0x1a0] sm:$0xff]
    %v80 = vld [vmem:[%s0 + $0x1a8] sm:$0xff]
    %v81 = vld [vmem:[%s0 + $0x1b0] sm:$0xff]
    %v82 = vld [vmem:[%s0 + $0x1b8] sm:$0xff]
    %v83 = vld [vmem:[%s0 + $0x1c0] sm:$0xff]
    %v84 = vld [vmem:[%s0 + $0x1c8] sm:$0xff]
    %v85 = vld [vmem:[%s0 + $0x1d0] sm:$0xff]
    %v86 = vld [vmem:[%s0 + $0x1d8] sm:$0xff]
    %v87 = vld [vmem:[%s0 + $0x1e0] sm:$0xff]
    %v88 = vld [vmem:[%s0 + $0x1e8] sm:$0xff]
    %v89 = vld [vmem:[%s0 + $0x1f0] sm:$0xff]
    %v90 = vld [vmem:[%s0 + $0x1f8] sm:$0xff]
    %v91 = vld [vmem:[%s2] sm:$0xff]
    %v92 = vld [vmem:[%s2 + $0x8] sm:$0xff]
    %v93 = vld [vmem:[%s2 + $0x10] sm:$0xff]
    %v94 = vld [vmem:[%s2 + $0x18] sm:$0xff]
    %v95 = vld [vmem:[%s2 + $0x20] sm:$0xf]
    %v96 = vld [vmem:[%s3] sm:$0x1]
    %v98 = vlaneseq
    %v99 = vshrl.u32 %v98, 7
    %v100 = vsub.s32 0, %v99
    %v101 = vrot.slane %v96, %v100
    %vm103 = vcmask 293888
    %v105 = vsel %vm103, %v27, 0
    %v108 = vsel %vm103, %v28, 0
    %v111 = vsel %vm103, %v29, 0
    %v114 = vsel %vm103, %v30, 0
    %v117 = vsel %vm103, %v31, 0
    %v120 = vsel %vm103, %v32, 0
    %v123 = vsel %vm103, %v33, 0
    %v126 = vsel %vm103, %v34, 0
    %v129 = vsel %vm103, %v35, 0
    %v132 = vsel %vm103, %v36, 0
    %v135 = vsel %vm103, %v37, 0
    %v138 = vsel %vm103, %v38, 0
    %v141 = vsel %vm103, %v39, 0
    %v144 = vsel %vm103, %v40, 0
    %v147 = vsel %vm103, %v41, 0
    %v150 = vsel %vm103, %v42, 0
    %v153 = vsel %vm103, %v43, 0
    %v156 = vsel %vm103, %v44, 0
    %v159 = vsel %vm103, %v45, 0
    %v162 = vsel %vm103, %v46, 0
    %v165 = vsel %vm103, %v47, 0
    %v168 = vsel %vm103, %v48, 0
    %v171 = vsel %vm103, %v49, 0
    %v174 = vsel %vm103, %v50, 0
    %v177 = vsel %vm103, %v51, 0
    %v180 = vsel %vm103, %v52, 0
    %v183 = vsel %vm103, %v53, 0
    %v186 = vsel %vm103, %v54, 0
    %v189 = vsel %vm103, %v55, 0
    %v192 = vsel %vm103, %v56, 0
    %v195 = vsel %vm103, %v57, 0
    %v198 = vsel %vm103, %v58, 0
    %v201 = vsel %vm103, %v59, 0
    %v204 = vsel %vm103, %v60, 0
    %v207 = vsel %vm103, %v61, 0
    %v210 = vsel %vm103, %v62, 0
    %v213 = vsel %vm103, %v63, 0
    %v216 = vsel %vm103, %v64, 0
    %v219 = vsel %vm103, %v65, 0
    %v222 = vsel %vm103, %v66, 0
    %v225 = vsel %vm103, %v67, 0
    %v228 = vsel %vm103, %v68, 0
    %v231 = vsel %vm103, %v69, 0
    %v234 = vsel %vm103, %v70, 0
    %v237 = vsel %vm103, %v71, 0
    %v240 = vsel %vm103, %v72, 0
    %v243 = vsel %vm103, %v73, 0
    %v246 = vsel %vm103, %v74, 0
    %v249 = vsel %vm103, %v75, 0
    %v252 = vsel %vm103, %v76, 0
    %v255 = vsel %vm103, %v77, 0
    %v258 = vsel %vm103, %v78, 0
    %v261 = vsel %vm103, %v79, 0
    %v264 = vsel %vm103, %v80, 0
    %v267 = vsel %vm103, %v81, 0
    %v270 = vsel %vm103, %v82, 0
    %v273 = vsel %vm103, %v83, 0
    %v276 = vsel %vm103, %v84, 0
    %v279 = vsel %vm103, %v85, 0
    %v282 = vsel %vm103, %v86, 0
    %v285 = vsel %vm103, %v87, 0
    %v288 = vsel %vm103, %v88, 0
    %v291 = vsel %vm103, %v89, 0
    %v294 = vsel %vm103, %v90, 0
    %vm296 = vcmask 1043456
    %v298 = vsel %vm296, %v95, 0
    %300 = vmatprep.subr.mxu0 0.0
    %301 = vmatpush1.msra.mxu0 %v91
    %302 = vmatprep.subr.mxu0 0.0
    %303 = vmatpush1.msra.mxu0 %v92
    %304 = vmatprep.subr.mxu0 0.0
    %305 = vmatpush1.msra.mxu0 %v93
    %306 = vmatprep.subr.mxu0 0.0
    %307 = vmatpush1.msra.mxu0 %v94
    %308 = vmatprep.subr.mxu0 0.0
    %309 = vmatpush1.msra.mxu0 %v298
    %310 = vmatprep.subr.mxu0 0.0
    %311 = vmatpush1.msra.mxu0 0.0
    %312 = vmatprep.subr.mxu0 0.0
    %313 = vmatpush1.msra.mxu0 0.0
    %314 = vmatprep.subr.mxu0 0.0
    %315 = vmatpush1.msra.mxu0 0.0
    %316 = vmatprep.subr.mxu0 0.0
    %317 = vmatpush1.msra.mxu0 0.0
    %318 = vmatprep.subr.mxu0 0.0
    %319 = vmatpush1.msra.mxu0 0.0
    %320 = vmatprep.subr.mxu0 0.0
    %321 = vmatpush1.msra.mxu0 0.0
    %322 = vmatprep.subr.mxu0 0.0
    %323 = vmatpush1.msra.mxu0 0.0
    %324 = vmatprep.subr.mxu0 0.0
    %325 = vmatpush1.msra.mxu0 0.0
    %326 = vmatprep.subr.mxu0 0.0
    %327 = vmatpush1.msra.mxu0 0.0
    %328 = vmatprep.subr.mxu0 0.0
    %329 = vmatpush1.msra.mxu0 0.0
    %330 = vmatprep.subr.mxu0 0.0
    %331 = vmatpush1.msra.mxu0 0.0
    %332 = vmatprep.subr.mxu0 0.0
    %333 = vmatpush1.msra.mxu0 0.0
    %334 = vmatprep.subr.mxu0 0.0
    %335 = vmatpush1.msra.mxu0 0.0
    %336 = vmatprep.subr.mxu0 0.0
    %337 = vmatpush1.msra.mxu0 0.0
    %338 = vmatprep.subr.mxu0 0.0
    %339 = vmatpush1.msra.mxu0 0.0
    %340 = vmatprep.subr.mxu0 0.0
    %341 = vmatpush1.msra.mxu0 0.0
    %342 = vmatprep.subr.mxu0 0.0
    %343 = vmatpush1.msra.mxu0 0.0
    %344 = vmatprep.subr.mxu0 0.0
    %345 = vmatpush1.msra.mxu0 0.0
    %346 = vmatprep.subr.mxu0 0.0
    %347 = vmatpush1.msra.mxu0 0.0
    %348 = vmatprep.subr.mxu0 0.0
    %349 = vmatpush1.msra.mxu0 0.0
    %350 = vmatprep.subr.mxu0 0.0
    %351 = vmatpush1.msra.mxu0 0.0
    %352 = vmatprep.subr.mxu0 0.0
    %353 = vmatpush1.msra.mxu0 0.0
    %354 = vmatprep.subr.mxu0 0.0
    %355 = vmatpush1.msra.mxu0 0.0
    %356 = vmatprep.subr.mxu0 0.0
    %357 = vmatpush1.msra.mxu0 0.0
    %358 = vmatprep.subr.mxu0 0.0
    %359 = vmatpush1.msra.mxu0 0.0
    %360 = vmatprep.subr.mxu0 0.0
    %361 = vmatpush1.msra.mxu0 0.0
    %362 = vmatprep.subr.mxu0 0.0
    %363 = vmatpush1.msra.mxu0 0.0
    %364 = vmatprep.mubr.f32.mxu0 0.0
    %365 = vmatmul.mubr.f32.gmra.mrb[0].mxu0 %v105
    %v366 = vpop.f32.mrb[0].mxu0
    %v367 = vadd.f32 %v101, %v366
    %v368 = vpop.f32.mrb[0].mxu0
    %369 = vmatprep.mubr.f32.mxu0 0.0
    %370 = vmatmul.mubr.f32.gmra.mrb[0].mxu0 %v108
    %v371 = vpop.f32.mrb[0].mxu0
    %v372 = vadd.f32 %v101, %v371
    %v373 = vpop.f32.mrb[0].mxu0
    %374 = vmatprep.mubr.f32.mxu0 0.0
    %375 = vmatmul.mubr.f32.gmra.mrb[0].mxu0 %v111
    %v376 = vpop.f32.mrb[0].mxu0
    %v377 = vadd.f32 %v101, %v376
    %v378 = vpop.f32.mrb[0].mxu0
    %379 = vmatprep.mubr.f32.mxu0 0.0
    %380 = vmatmul.mubr.f32.gmra.mrb[0].mxu0 %v114
    %v381 = vpop.f32.mrb[0].mxu0
    %v382 = vadd.f32 %v101, %v381
    %v383 = vpop.f32.mrb[0].mxu0
    %384 = vmatprep.mubr.f32.mxu0 0.0
    %385 = vmatmul.mubr.f32.gmra.mrb[0].mxu0 %v117
    %v386 = vpop.f32.mrb[0].mxu0
    %v387 = vadd.f32 %v101, %v386
    %v388 = vpop.f32.mrb[0].mxu0
    %389 = vmatprep.mubr.f32.mxu0 0.0
    %390 = vmatmul.mubr.f32.gmra.mrb[0].mxu0 %v120
    %v391 = vpop.f32.mrb[0].mxu0
    %v392 = vadd.f32 %v101, %v391
    %v393 = vpop.f32.mrb[0].mxu0
    %394 = vmatprep.mubr.f32.mxu0 0.0
    %395 = vmatmul.mubr.f32.gmra.mrb[0].mxu0 %v123
    %v396 = vpop.f32.mrb[0].mxu0
    %v397 = vadd.f32 %v101, %v396
    %v398 = vpop.f32.mrb[0].mxu0
    %399 = vmatprep.mubr.f32.mxu0 0.0
    %400 = vmatmul.mubr.f32.gmra.mrb[0].mxu0 %v126
    %v401 = vpop.f32.mrb[0].mxu0
    %v402 = vadd.f32 %v101, %v401
    %v403 = vpop.f32.mrb[0].mxu0
    %404 = vmatprep.mubr.f32.mxu0 0.0
    %405 = vmatmul.mubr.f32.gmra.mrb[0].mxu0 %v129
    %v406 = vpop.f32.mrb[0].mxu0
    %v407 = vadd.f32 %v101, %v406
    %v408 = vpop.f32.mrb[0].mxu0
    %409 = vmatprep.mubr.f32.mxu0 0.0
    %410 = vmatmul.mubr.f32.gmra.mrb[0].mxu0 %v132
    %v411 = vpop.f32.mrb[0].mxu0
    %v412 = vadd.f32 %v101, %v411
    %v413 = vpop.f32.mrb[0].mxu0
    %414 = vmatprep.mubr.f32.mxu0 0.0
    %415 = vmatmul.mubr.f32.gmra.mrb[0].mxu0 %v135
    %v416 = vpop.f32.mrb[0].mxu0
    %v417 = vadd.f32 %v101, %v416
    %v418 = vpop.f32.mrb[0].mxu0
    %419 = vmatprep.mubr.f32.mxu0 0.0
    %420 = vmatmul.mubr.f32.gmra.mrb[0].mxu0 %v138
    %v421 = vpop.f32.mrb[0].mxu0
    %v422 = vadd.f32 %v101, %v421
    %v423 = vpop.f32.mrb[0].mxu0
    %424 = vmatprep.mubr.f32.mxu0 0.0
    %425 = vmatmul.mubr.f32.gmra.mrb[0].mxu0 %v141
    %v426 = vpop.f32.mrb[0].mxu0
    %v427 = vadd.f32 %v101, %v426
    %v428 = vpop.f32.mrb[0].mxu0
    %429 = vmatprep.mubr.f32.mxu0 0.0
    %430 = vmatmul.mubr.f32.gmra.mrb[0].mxu0 %v144
    %v431 = vpop.f32.mrb[0].mxu0
    %v432 = vadd.f32 %v101, %v431
    %v433 = vpop.f32.mrb[0].mxu0
    %434 = vmatprep.mubr.f32.mxu0 0.0
    %435 = vmatmul.mubr.f32.gmra.mrb[0].mxu0 %v147
    %v436 = vpop.f32.mrb[0].mxu0
    %v437 = vadd.f32 %v101, %v436
    %v438 = vpop.f32.mrb[0].mxu0
    %439 = vmatprep.mubr.f32.mxu0 0.0
    %440 = vmatmul.mubr.f32.gmra.mrb[0].mxu0 %v150
    %v441 = vpop.f32.mrb[0].mxu0
    %v442 = vadd.f32 %v101, %v441
    %v443 = vpop.f32.mrb[0].mxu0
    %444 = vmatprep.mubr.f32.mxu0 0.0
    %445 = vmatmul.mubr.f32.gmra.mrb[0].mxu0 %v153
    %v446 = vpop.f32.mrb[0].mxu0
    %v447 = vadd.f32 %v101, %v446
    %v448 = vpop.f32.mrb[0].mxu0
    %449 = vmatprep.mubr.f32.mxu0 0.0
    %450 = vmatmul.mubr.f32.gmra.mrb[0].mxu0 %v156
    %v451 = vpop.f32.mrb[0].mxu0
    %v452 = vadd.f32 %v101, %v451
    %v453 = vpop.f32.mrb[0].mxu0
    %454 = vmatprep.mubr.f32.mxu0 0.0
    %455 = vmatmul.mubr.f32.gmra.mrb[0].mxu0 %v159
    %v456 = vpop.f32.mrb[0].mxu0
    %v457 = vadd.f32 %v101, %v456
    %v458 = vpop.f32.mrb[0].mxu0
    %459 = vmatprep.mubr.f32.mxu0 0.0
    %460 = vmatmul.mubr.f32.gmra.mrb[0].mxu0 %v162
    %v461 = vpop.f32.mrb[0].mxu0
    %v462 = vadd.f32 %v101, %v461
    %v463 = vpop.f32.mrb[0].mxu0
    %464 = vmatprep.mubr.f32.mxu0 0.0
    %465 = vmatmul.mubr.f32.gmra.mrb[0].mxu0 %v165
    %v466 = vpop.f32.mrb[0].mxu0
    %v467 = vadd.f32 %v101, %v466
    %v468 = vpop.f32.mrb[0].mxu0
    %469 = vmatprep.mubr.f32.mxu0 0.0
    %470 = vmatmul.mubr.f32.gmra.mrb[0].mxu0 %v168
    %v471 = vpop.f32.mrb[0].mxu0
    %v472 = vadd.f32 %v101, %v471
    %v473 = vpop.f32.mrb[0].mxu0
    %474 = vmatprep.mubr.f32.mxu0 0.0
    %475 = vmatmul.mubr.f32.gmra.mrb[0].mxu0 %v171
    %v476 = vpop.f32.mrb[0].mxu0
    %v477 = vadd.f32 %v101, %v476
    %v478 = vpop.f32.mrb[0].mxu0
    %479 = vmatprep.mubr.f32.mxu0 0.0
    %480 = vmatmul.mubr.f32.gmra.mrb[0].mxu0 %v174
    %v481 = vpop.f32.mrb[0].mxu0
    %v482 = vadd.f32 %v101, %v481
    %v483 = vpop.f32.mrb[0].mxu0
    %484 = vmatprep.mubr.f32.mxu0 0.0
    %485 = vmatmul.mubr.f32.gmra.mrb[0].mxu0 %v177
    %v486 = vpop.f32.mrb[0].mxu0
    %v487 = vadd.f32 %v101, %v486
    %v488 = vpop.f32.mrb[0].mxu0
    %489 = vmatprep.mubr.f32.mxu0 0.0
    %490 = vmatmul.mubr.f32.gmra.mrb[0].mxu0 %v180
    %v491 = vpop.f32.mrb[0].mxu0
    %v492 = vadd.f32 %v101, %v491
    %v493 = vpop.f32.mrb[0].mxu0
    %494 = vmatprep.mubr.f32.mxu0 0.0
    %495 = vmatmul.mubr.f32.gmra.mrb[0].mxu0 %v183
    %v496 = vpop.f32.mrb[0].mxu0
    %v497 = vadd.f32 %v101, %v496
    %v498 = vpop.f32.mrb[0].mxu0
    %499 = vmatprep.mubr.f32.mxu0 0.0
    %500 = vmatmul.mubr.f32.gmra.mrb[0].mxu0 %v186
    %v501 = vpop.f32.mrb[0].mxu0
    %v502 = vadd.f32 %v101, %v501
    %v503 = vpop.f32.mrb[0].mxu0
    %504 = vmatprep.mubr.f32.mxu0 0.0
    %505 = vmatmul.mubr.f32.gmra.mrb[0].mxu0 %v189
    %v506 = vpop.f32.mrb[0].mxu0
    %v507 = vadd.f32 %v101, %v506
    %v508 = vpop.f32.mrb[0].mxu0
    %509 = vmatprep.mubr.f32.mxu0 0.0
    %510 = vmatmul.mubr.f32.gmra.mrb[0].mxu0 %v192
    %v511 = vpop.f32.mrb[0].mxu0
    %v512 = vadd.f32 %v101, %v511
    %v513 = vpop.f32.mrb[0].mxu0
    %514 = vmatprep.mubr.f32.mxu0 0.0
    %515 = vmatmul.mubr.f32.gmra.mrb[0].mxu0 %v195
    %v516 = vpop.f32.mrb[0].mxu0
    %v517 = vadd.f32 %v101, %v516
    %v518 = vpop.f32.mrb[0].mxu0
    %519 = vmatprep.mubr.f32.mxu0 0.0
    %520 = vmatmul.mubr.f32.gmra.mrb[0].mxu0 %v198
    %v521 = vpop.f32.mrb[0].mxu0
    %v522 = vadd.f32 %v101, %v521
    %v523 = vpop.f32.mrb[0].mxu0
    %524 = vmatprep.mubr.f32.mxu0 0.0
    %525 = vmatmul.mubr.f32.gmra.mrb[0].mxu0 %v201
    %v526 = vpop.f32.mrb[0].mxu0
    %v527 = vadd.f32 %v101, %v526
    %v528 = vpop.f32.mrb[0].mxu0
    %529 = vmatprep.mubr.f32.mxu0 0.0
    %530 = vmatmul.mubr.f32.gmra.mrb[0].mxu0 %v204
    %v531 = vpop.f32.mrb[0].mxu0
    %v532 = vadd.f32 %v101, %v531
    %v533 = vpop.f32.mrb[0].mxu0
    %534 = vmatprep.mubr.f32.mxu0 0.0
    %535 = vmatmul.mubr.f32.gmra.mrb[0].mxu0 %v207
    %v536 = vpop.f32.mrb[0].mxu0
    %v537 = vadd.f32 %v101, %v536
    %v538 = vpop.f32.mrb[0].mxu0
    %539 = vmatprep.mubr.f32.mxu0 0.0
    %540 = vmatmul.mubr.f32.gmra.mrb[0].mxu0 %v210
    %v541 = vpop.f32.mrb[0].mxu0
    %v542 = vadd.f32 %v101, %v541
    %v543 = vpop.f32.mrb[0].mxu0
    %544 = vmatprep.mubr.f32.mxu0 0.0
    %545 = vmatmul.mubr.f32.gmra.mrb[0].mxu0 %v213
    %v546 = vpop.f32.mrb[0].mxu0
    %v547 = vadd.f32 %v101, %v546
    %v548 = vpop.f32.mrb[0].mxu0
    %549 = vmatprep.mubr.f32.mxu0 0.0
    %550 = vmatmul.mubr.f32.gmra.mrb[0].mxu0 %v216
    %v551 = vpop.f32.mrb[0].mxu0
    %v552 = vadd.f32 %v101, %v551
    %v553 = vpop.f32.mrb[0].mxu0
    %554 = vmatprep.mubr.f32.mxu0 0.0
    %555 = vmatmul.mubr.f32.gmra.mrb[0].mxu0 %v219
    %v556 = vpop.f32.mrb[0].mxu0
    %v557 = vadd.f32 %v101, %v556
    %v558 = vpop.f32.mrb[0].mxu0
    %559 = vmatprep.mubr.f32.mxu0 0.0
    %560 = vmatmul.mubr.f32.gmra.mrb[0].mxu0 %v222
    %v561 = vpop.f32.mrb[0].mxu0
    %v562 = vadd.f32 %v101, %v561
    %v563 = vpop.f32.mrb[0].mxu0
    %564 = vmatprep.mubr.f32.mxu0 0.0
    %565 = vmatmul.mubr.f32.gmra.mrb[0].mxu0 %v225
    %v566 = vpop.f32.mrb[0].mxu0
    %v567 = vadd.f32 %v101, %v566
    %v568 = vpop.f32.mrb[0].mxu0
    %569 = vmatprep.mubr.f32.mxu0 0.0
    %570 = vmatmul.mubr.f32.gmra.mrb[0].mxu0 %v228
    %v571 = vpop.f32.mrb[0].mxu0
    %v572 = vadd.f32 %v101, %v571
    %v573 = vpop.f32.mrb[0].mxu0
    %574 = vmatprep.mubr.f32.mxu0 0.0
    %575 = vmatmul.mubr.f32.gmra.mrb[0].mxu0 %v231
    %v576 = vpop.f32.mrb[0].mxu0
    %v577 = vadd.f32 %v101, %v576
    %v578 = vpop.f32.mrb[0].mxu0
    %579 = vmatprep.mubr.f32.mxu0 0.0
    %580 = vmatmul.mubr.f32.gmra.mrb[0].mxu0 %v234
    %v581 = vpop.f32.mrb[0].mxu0
    %v582 = vadd.f32 %v101, %v581
    %v583 = vpop.f32.mrb[0].mxu0
    %584 = vmatprep.mubr.f32.mxu0 0.0
    %585 = vmatmul.mubr.f32.gmra.mrb[0].mxu0 %v237
    %v586 = vpop.f32.mrb[0].mxu0
    %v587 = vadd.f32 %v101, %v586
    %v588 = vpop.f32.mrb[0].mxu0
    %589 = vmatprep.mubr.f32.mxu0 0.0
    %590 = vmatmul.mubr.f32.gmra.mrb[0].mxu0 %v240
    %v591 = vpop.f32.mrb[0].mxu0
    %v592 = vadd.f32 %v101, %v591
    %v593 = vpop.f32.mrb[0].mxu0
    %594 = vmatprep.mubr.f32.mxu0 0.0
    %595 = vmatmul.mubr.f32.gmra.mrb[0].mxu0 %v243
    %v596 = vpop.f32.mrb[0].mxu0
    %v597 = vadd.f32 %v101, %v596
    %v598 = vpop.f32.mrb[0].mxu0
    %599 = vmatprep.mubr.f32.mxu0 0.0
    %600 = vmatmul.mubr.f32.gmra.mrb[0].mxu0 %v246
    %v601 = vpop.f32.mrb[0].mxu0
    %v602 = vadd.f32 %v101, %v601
    %v603 = vpop.f32.mrb[0].mxu0
    %604 = vmatprep.mubr.f32.mxu0 0.0
    %605 = vmatmul.mubr.f32.gmra.mrb[0].mxu0 %v249
    %v606 = vpop.f32.mrb[0].mxu0
    %v607 = vadd.f32 %v101, %v606
    %v608 = vpop.f32.mrb[0].mxu0
    %609 = vmatprep.mubr.f32.mxu0 0.0
    %610 = vmatmul.mubr.f32.gmra.mrb[0].mxu0 %v252
    %v611 = vpop.f32.mrb[0].mxu0
    %v612 = vadd.f32 %v101, %v611
    %v613 = vpop.f32.mrb[0].mxu0
    %614 = vmatprep.mubr.f32.mxu0 0.0
    %615 = vmatmul.mubr.f32.gmra.mrb[0].mxu0 %v255
    %v616 = vpop.f32.mrb[0].mxu0
    %v617 = vadd.f32 %v101, %v616
    %v618 = vpop.f32.mrb[0].mxu0
    %619 = vmatprep.mubr.f32.mxu0 0.0
    %620 = vmatmul.mubr.f32.gmra.mrb[0].mxu0 %v258
    %v621 = vpop.f32.mrb[0].mxu0
    %v622 = vadd.f32 %v101, %v621
    %v623 = vpop.f32.mrb[0].mxu0
    %624 = vmatprep.mubr.f32.mxu0 0.0
    %625 = vmatmul.mubr.f32.gmra.mrb[0].mxu0 %v261
    %v626 = vpop.f32.mrb[0].mxu0
    %v627 = vadd.f32 %v101, %v626
    %v628 = vpop.f32.mrb[0].mxu0
    %629 = vmatprep.mubr.f32.mxu0 0.0
    %630 = vmatmul.mubr.f32.gmra.mrb[0].mxu0 %v264
    %v631 = vpop.f32.mrb[0].mxu0
    %v632 = vadd.f32 %v101, %v631
    %v633 = vpop.f32.mrb[0].mxu0
    %634 = vmatprep.mubr.f32.mxu0 0.0
    %635 = vmatmul.mubr.f32.gmra.mrb[0].mxu0 %v267
    %v636 = vpop.f32.mrb[0].mxu0
    %v637 = vadd.f32 %v101, %v636
    %v638 = vpop.f32.mrb[0].mxu0
    %639 = vmatprep.mubr.f32.mxu0 0.0
    %640 = vmatmul.mubr.f32.gmra.mrb[0].mxu0 %v270
    %v641 = vpop.f32.mrb[0].mxu0
    %v642 = vadd.f32 %v101, %v641
    %v643 = vpop.f32.mrb[0].mxu0
    %644 = vmatprep.mubr.f32.mxu0 0.0
    %645 = vmatmul.mubr.f32.gmra.mrb[0].mxu0 %v273
    %v646 = vpop.f32.mrb[0].mxu0
    %v647 = vadd.f32 %v101, %v646
    %v648 = vpop.f32.mrb[0].mxu0
    %649 = vmatprep.mubr.f32.mxu0 0.0
    %650 = vmatmul.mubr.f32.gmra.mrb[0].mxu0 %v276
    %v651 = vpop.f32.mrb[0].mxu0
    %v652 = vadd.f32 %v101, %v651
    %v653 = vpop.f32.mrb[0].mxu0
    %654 = vmatprep.mubr.f32.mxu0 0.0
    %655 = vmatmul.mubr.f32.gmra.mrb[0].mxu0 %v279
    %v656 = vpop.f32.mrb[0].mxu0
    %v657 = vadd.f32 %v101, %v656
    %v658 = vpop.f32.mrb[0].mxu0
    %659 = vmatprep.mubr.f32.mxu0 0.0
    %660 = vmatmul.mubr.f32.gmra.mrb[0].mxu0 %v282
    %v661 = vpop.f32.mrb[0].mxu0
    %v662 = vadd.f32 %v101, %v661
    %v663 = vpop.f32.mrb[0].mxu0
    %664 = vmatprep.mubr.f32.mxu0 0.0
    %665 = vmatmul.mubr.f32.gmra.mrb[0].mxu0 %v285
    %v666 = vpop.f32.mrb[0].mxu0
    %v667 = vadd.f32 %v101, %v666
    %v668 = vpop.f32.mrb[0].mxu0
    %669 = vmatprep.mubr.f32.mxu0 0.0
    %670 = vmatmul.mubr.f32.gmra.mrb[0].mxu0 %v288
    %v671 = vpop.f32.mrb[0].mxu0
    %v672 = vadd.f32 %v101, %v671
    %v673 = vpop.f32.mrb[0].mxu0
    %674 = vmatprep.mubr.f32.mxu0 0.0
    %675 = vmatmul.mubr.f32.gmra.mrb[0].mxu0 %v291
    %v676 = vpop.f32.mrb[0].mxu0
    %v677 = vadd.f32 %v101, %v676
    %v678 = vpop.f32.mrb[0].mxu0
    %679 = vmatprep.mubr.f32.mxu0 0.0
    %680 = vmatmul.mubr.f32.gmra.mrb[0].mxu0 %v294
    %v681 = vpop.f32.mrb[0].mxu0
    %v682 = vadd.f32 %v101, %v681
    %v683 = vpop.f32.mrb[0].mxu0
    %684 = vdwg.mxu0
    %v685 = vmax.f32 %v367, 0.0
    %v686 = vmax.f32 %v372, 0.0
    %v687 = vmax.f32 %v377, 0.0
    %v688 = vmax.f32 %v382, 0.0
    %v689 = vmax.f32 %v387, 0.0
    %v690 = vmax.f32 %v392, 0.0
    %v691 = vmax.f32 %v397, 0.0
    %v692 = vmax.f32 %v402, 0.0
    %v693 = vmax.f32 %v407, 0.0
    %v694 = vmax.f32 %v412, 0.0
    %v695 = vmax.f32 %v417, 0.0
    %v696 = vmax.f32 %v422, 0.0
    %v697 = vmax.f32 %v427, 0.0
    %v698 = vmax.f32 %v432, 0.0
    %v699 = vmax.f32 %v437, 0.0
    %v700 = vmax.f32 %v442, 0.0
    %v701 = vmax.f32 %v447, 0.0
    %v702 = vmax.f32 %v452, 0.0
    %v703 = vmax.f32 %v457, 0.0
    %v704 = vmax.f32 %v462, 0.0
    %v705 = vmax.f32 %v467, 0.0
    %v706 = vmax.f32 %v472, 0.0
    %v707 = vmax.f32 %v477, 0.0
    %v708 = vmax.f32 %v482, 0.0
    %v709 = vmax.f32 %v487, 0.0
    %v710 = vmax.f32 %v492, 0.0
    %v711 = vmax.f32 %v497, 0.0
    %v712 = vmax.f32 %v502, 0.0
    %v713 = vmax.f32 %v507, 0.0
    %v714 = vmax.f32 %v512, 0.0
    %v715 = vmax.f32 %v517, 0.0
    %v716 = vmax.f32 %v522, 0.0
    %v717 = vmax.f32 %v527, 0.0
    %v718 = vmax.f32 %v532, 0.0
    %v719 = vmax.f32 %v537, 0.0
    %v720 = vmax.f32 %v542, 0.0
    %v721 = vmax.f32 %v547, 0.0
    %v722 = vmax.f32 %v552, 0.0
    %v723 = vmax.f32 %v557, 0.0
    %v724 = vmax.f32 %v562, 0.0
    %v725 = vmax.f32 %v567, 0.0
    %v726 = vmax.f32 %v572, 0.0
    %v727 = vmax.f32 %v577, 0.0
    %v728 = vmax.f32 %v582, 0.0
    %v729 = vmax.f32 %v587, 0.0
    %v730 = vmax.f32 %v592, 0.0
    %v731 = vmax.f32 %v597, 0.0
    %v732 = vmax.f32 %v602, 0.0
    %v733 = vmax.f32 %v607, 0.0
    %v734 = vmax.f32 %v612, 0.0
    %v735 = vmax.f32 %v617, 0.0
    %v736 = vmax.f32 %v622, 0.0
    %v737 = vmax.f32 %v627, 0.0
    %v738 = vmax.f32 %v632, 0.0
    %v739 = vmax.f32 %v637, 0.0
    %v740 = vmax.f32 %v642, 0.0
    %v741 = vmax.f32 %v647, 0.0
    %v742 = vmax.f32 %v652, 0.0
    %v743 = vmax.f32 %v657, 0.0
    %v744 = vmax.f32 %v662, 0.0
    %v745 = vmax.f32 %v667, 0.0
    %v746 = vmax.f32 %v672, 0.0
    %v747 = vmax.f32 %v677, 0.0
    %v748 = vmax.f32 %v682, 0.0
    %vm749 = vcmask 261120
    %v750 = vsel %vm749, %v685, 0.0
    %v751 = vsel %vm749, %v686, 0.0
    %v752 = vadd.f32 %v750, %v751
    %v753 = vsel %vm749, %v687, 0.0
    %v754 = vadd.f32 %v752, %v753
    %v755 = vsel %vm749, %v688, 0.0
    %v756 = vadd.f32 %v754, %v755
    %v757 = vsel %vm749, %v689, 0.0
    %v758 = vadd.f32 %v756, %v757
    %v759 = vsel %vm749, %v690, 0.0
    %v760 = vadd.f32 %v758, %v759
    %v761 = vsel %vm749, %v691, 0.0
    %v762 = vadd.f32 %v760, %v761
    %v763 = vsel %vm749, %v692, 0.0
    %v764 = vadd.f32 %v762, %v763
    %v765 = vsel %vm749, %v693, 0.0
    %v766 = vadd.f32 %v764, %v765
    %v767 = vsel %vm749, %v694, 0.0
    %v768 = vadd.f32 %v766, %v767
    %v769 = vsel %vm749, %v695, 0.0
    %v770 = vadd.f32 %v768, %v769
    %v771 = vsel %vm749, %v696, 0.0
    %v772 = vadd.f32 %v770, %v771
    %v773 = vsel %vm749, %v697, 0.0
    %v774 = vadd.f32 %v772, %v773
    %v775 = vsel %vm749, %v698, 0.0
    %v776 = vadd.f32 %v774, %v775
    %v777 = vsel %vm749, %v699, 0.0
    %v778 = vadd.f32 %v776, %v777
    %v779 = vsel %vm749, %v700, 0.0
    %v780 = vadd.f32 %v778, %v779
    %v781 = vsel %vm749, %v701, 0.0
    %v782 = vadd.f32 %v780, %v781
    %v783 = vsel %vm749, %v702, 0.0
    %v784 = vadd.f32 %v782, %v783
    %v785 = vsel %vm749, %v703, 0.0
    %v786 = vadd.f32 %v784, %v785
    %v787 = vsel %vm749, %v704, 0.0
    %v788 = vadd.f32 %v786, %v787
    %v789 = vsel %vm749, %v705, 0.0
    %v790 = vadd.f32 %v788, %v789
    %v791 = vsel %vm749, %v706, 0.0
    %v792 = vadd.f32 %v790, %v791
    %v793 = vsel %vm749, %v707, 0.0
    %v794 = vadd.f32 %v792, %v793
    %v795 = vsel %vm749, %v708, 0.0
    %v796 = vadd.f32 %v794, %v795
    %v797 = vsel %vm749, %v709, 0.0
    %v798 = vadd.f32 %v796, %v797
    %v799 = vsel %vm749, %v710, 0.0
    %v800 = vadd.f32 %v798, %v799
    %v801 = vsel %vm749, %v711, 0.0
    %v802 = vadd.f32 %v800, %v801
    %v803 = vsel %vm749, %v712, 0.0
    %v804 = vadd.f32 %v802, %v803
    %v805 = vsel %vm749, %v713, 0.0
    %v806 = vadd.f32 %v804, %v805
    %v807 = vsel %vm749, %v714, 0.0
    %v808 = vadd.f32 %v806, %v807
    %v809 = vsel %vm749, %v715, 0.0
    %v810 = vadd.f32 %v808, %v809
    %v811 = vsel %vm749, %v716, 0.0
    %v812 = vadd.f32 %v810, %v811
    %v813 = vrot.slane %v812, 4
    %v814 = vadd.f32 %v812, %v813
    %v815 = vrot.slane %v814, 2
    %v816 = vadd.f32 %v814, %v815
    %v817 = vrot.slane %v816, 1
    %v818 = vadd.f32 %v816, %v817
    %v819 = vsel %vm749, %v717, 0.0
    %v820 = vsel %vm749, %v718, 0.0
    %v821 = vadd.f32 %v819, %v820
    %v822 = vsel %vm749, %v719, 0.0
    %v823 = vadd.f32 %v821, %v822
    %v824 = vsel %vm749, %v720, 0.0
    %v825 = vadd.f32 %v823, %v824
    %v826 = vsel %vm749, %v721, 0.0
    %v827 = vadd.f32 %v825, %v826
    %v828 = vsel %vm749, %v722, 0.0
    %v829 = vadd.f32 %v827, %v828
    %v830 = vsel %vm749, %v723, 0.0
    %v831 = vadd.f32 %v829, %v830
    %v832 = vsel %vm749, %v724, 0.0
    %v833 = vadd.f32 %v831, %v832
    %v834 = vsel %vm749, %v725, 0.0
    %v835 = vadd.f32 %v833, %v834
    %v836 = vsel %vm749, %v726, 0.0
    %v837 = vadd.f32 %v835, %v836
    %v838 = vsel %vm749, %v727, 0.0
    %v839 = vadd.f32 %v837, %v838
    %v840 = vsel %vm749, %v728, 0.0
    %v841 = vadd.f32 %v839, %v840
    %v842 = vsel %vm749, %v729, 0.0
    %v843 = vadd.f32 %v841, %v842
    %v844 = vsel %vm749, %v730, 0.0
    %v845 = vadd.f32 %v843, %v844
    %v846 = vsel %vm749, %v731, 0.0
    %v847 = vadd.f32 %v845, %v846
    %v848 = vsel %vm749, %v732, 0.0
    %v849 = vadd.f32 %v847, %v848
    %v850 = vsel %vm749, %v733, 0.0
    %v851 = vadd.f32 %v849, %v850
    %v852 = vsel %vm749, %v734, 0.0
    %v853 = vadd.f32 %v851, %v852
    %v854 = vsel %vm749, %v735, 0.0
    %v855 = vadd.f32 %v853, %v854
    %v856 = vsel %vm749, %v736, 0.0
    %v857 = vadd.f32 %v855, %v856
    %v858 = vsel %vm749, %v737, 0.0
    %v859 = vadd.f32 %v857, %v858
    %v860 = vsel %vm749, %v738, 0.0
    %v861 = vadd.f32 %v859, %v860
    %v862 = vsel %vm749, %v739, 0.0
    %v863 = vadd.f32 %v861, %v862
    %v864 = vsel %vm749, %v740, 0.0
    %v865 = vadd.f32 %v863, %v864
    %v866 = vsel %vm749, %v741, 0.0
    %v867 = vadd.f32 %v865, %v866
    %v868 = vsel %vm749, %v742, 0.0
    %v869 = vadd.f32 %v867, %v868
    %v870 = vsel %vm749, %v743, 0.0
    %v871 = vadd.f32 %v869, %v870
    %v872 = vsel %vm749, %v744, 0.0
    %v873 = vadd.f32 %v871, %v872
    %v874 = vsel %vm749, %v745, 0.0
    %v875 = vadd.f32 %v873, %v874
    %v876 = vsel %vm749, %v746, 0.0
    %v877 = vadd.f32 %v875, %v876
    %v878 = vsel %vm749, %v747, 0.0
    %v879 = vadd.f32 %v877, %v878
    %v880 = vsel %vm749, %v748, 0.0
    %v881 = vadd.f32 %v879, %v880
    %v882 = vrot.slane %v881, 4
    %v883 = vadd.f32 %v881, %v882
    %v884 = vrot.slane %v883, 2
    %v885 = vadd.f32 %v883, %v884
    %v886 = vrot.slane %v885, 1
    %v887 = vadd.f32 %v885, %v886
    %v888 = vmul.f32 %v818, 0.00390625
    %v889 = vmul.f32 %v887, 0.00390625
    %v890 = vld [vmem:[%s4] sm:$0xff]
    %v891 = vld [vmem:[%s4 + $0x8] sm:$0xff]
    %v892 = vld [vmem:[%s4 + $0x10] sm:$0xff]
    %v893 = vld [vmem:[%s4 + $0x18] sm:$0xff]
    %v894 = vld [vmem:[%s1] sm:$0x3]
    %v895 = vld [vmem:[%s5] sm:$0xff]
    %vm896 = vcmask 64512
    %v898 = vsel %vm896, %v894, 0
    %900 = vmatprep.subr.mxu0 0.0
    %901 = vmatpush1.msra.mxu0 %v895
    %902 = vmatprep.subr.mxu0 0.0
    %903 = vmatpush1.msra.mxu0 0.0
    %904 = vmatprep.subr.mxu0 0.0
    %905 = vmatpush1.msra.mxu0 0.0
    %906 = vmatprep.subr.mxu0 0.0
    %907 = vmatpush1.msra.mxu0 0.0
    %908 = vmatprep.subr.mxu0 0.0
    %909 = vmatpush1.msra.mxu0 0.0
    %910 = vmatprep.subr.mxu0 0.0
    %911 = vmatpush1.msra.mxu0 0.0
    %912 = vmatprep.subr.mxu0 0.0
    %913 = vmatpush1.msra.mxu0 0.0
    %914 = vmatprep.subr.mxu0 0.0
    %915 = vmatpush1.msra.mxu0 0.0
    %916 = vmatprep.subr.mxu0 0.0
    %917 = vmatpush1.msra.mxu0 0.0
    %918 = vmatprep.subr.mxu0 0.0
    %919 = vmatpush1.msra.mxu0 0.0
    %920 = vmatprep.subr.mxu0 0.0
    %921 = vmatpush1.msra.mxu0 0.0
    %922 = vmatprep.subr.mxu0 0.0
    %923 = vmatpush1.msra.mxu0 0.0
    %924 = vmatprep.subr.mxu0 0.0
    %925 = vmatpush1.msra.mxu0 0.0
    %926 = vmatprep.subr.mxu0 0.0
    %927 = vmatpush1.msra.mxu0 0.0
    %928 = vmatprep.subr.mxu0 0.0
    %929 = vmatpush1.msra.mxu0 0.0
    %930 = vmatprep.subr.mxu0 0.0
    %931 = vmatpush1.msra.mxu0 0.0
    %932 = vmatprep.subr.mxu0 0.0
    %933 = vmatpush1.msra.mxu0 0.0
    %934 = vmatprep.subr.mxu0 0.0
    %935 = vmatpush1.msra.mxu0 0.0
    %936 = vmatprep.subr.mxu0 0.0
    %937 = vmatpush1.msra.mxu0 0.0
    %938 = vmatprep.subr.mxu0 0.0
    %939 = vmatpush1.msra.mxu0 0.0
    %940 = vmatprep.subr.mxu0 0.0
    %941 = vmatpush1.msra.mxu0 0.0
    %942 = vmatprep.subr.mxu0 0.0
    %943 = vmatpush1.msra.mxu0 0.0
    %944 = vmatprep.subr.mxu0 0.0
    %945 = vmatpush1.msra.mxu0 0.0
    %946 = vmatprep.subr.mxu0 0.0
    %947 = vmatpush1.msra.mxu0 0.0
    %948 = vmatprep.subr.mxu0 0.0
    %949 = vmatpush1.msra.mxu0 0.0
    %950 = vmatprep.subr.mxu0 0.0
    %951 = vmatpush1.msra.mxu0 0.0
    %952 = vmatprep.subr.mxu0 0.0
    %953 = vmatpush1.msra.mxu0 0.0
    %954 = vmatprep.subr.mxu0 0.0
    %955 = vmatpush1.msra.mxu0 0.0
    %956 = vmatprep.subr.mxu0 0.0
    %957 = vmatpush1.msra.mxu0 0.0
    %958 = vmatprep.subr.mxu0 0.0
    %959 = vmatpush1.msra.mxu0 0.0
    %960 = vmatprep.subr.mxu0 0.0
    %961 = vmatpush1.msra.mxu0 0.0
    %962 = vmatprep.subr.mxu0 0.0
    %963 = vmatpush1.msra.mxu0 0.0
    %964 = vmatprep.mubr.f32.mxu0 0.0
    %965 = vmatmul.mubr.f32.gmra.mrb[0].mxu0 %v898
    %v966 = vpop.f32.mrb[0].mxu0
    %v967 = vadd.f32 0.0, %v966
    %v968 = vpop.f32.mrb[0].mxu0
    %969 = vdwg.mxu0
    %vm972 = vcmask 1041409
    %v973 = vsel %vm972, %v889, %v888
    %v974 = vsel %vm749, %v973, 0
    %976 = vmatprep.subr.mxu0 0.0
    %977 = vmatpush1.msra.mxu0 %v890
    %978 = vmatprep.subr.mxu0 0.0
    %979 = vmatpush1.msra.mxu0 %v891
    %980 = vmatprep.subr.mxu0 0.0
    %981 = vmatpush1.msra.mxu0 %v892
    %982 = vmatprep.subr.mxu0 0.0
    %983 = vmatpush1.msra.mxu0 %v893
    %984 = vmatprep.subr.mxu0 0.0
    %985 = vmatpush1.msra.mxu0 0.0
    %986 = vmatprep.subr.mxu0 0.0
    %987 = vmatpush1.msra.mxu0 0.0
    %988 = vmatprep.subr.mxu0 0.0
    %989 = vmatpush1.msra.mxu0 0.0
    %990 = vmatprep.subr.mxu0 0.0
    %991 = vmatpush1.msra.mxu0 0.0
    %992 = vmatprep.subr.mxu0 0.0
    %993 = vmatpush1.msra.mxu0 0.0
    %994 = vmatprep.subr.mxu0 0.0
    %995 = vmatpush1.msra.mxu0 0.0
    %996 = vmatprep.subr.mxu0 0.0
    %997 = vmatpush1.msra.mxu0 0.0
    %998 = vmatprep.subr.mxu0 0.0
    %999 = vmatpush1.msra.mxu0 0.0
    %1000 = vmatprep.subr.mxu0 0.0
    %1001 = vmatpush1.msra.mxu0 0.0
    %1002 = vmatprep.subr.mxu0 0.0
    %1003 = vmatpush1.msra.mxu0 0.0
    %1004 = vmatprep.subr.mxu0 0.0
    %1005 = vmatpush1.msra.mxu0 0.0
    %1006 = vmatprep.subr.mxu0 0.0
    %1007 = vmatpush1.msra.mxu0 0.0
    %1008 = vmatprep.subr.mxu0 0.0
    %1009 = vmatpush1.msra.mxu0 0.0
    %1010 = vmatprep.subr.mxu0 0.0
    %1011 = vmatpush1.msra.mxu0 0.0
    %1012 = vmatprep.subr.mxu0 0.0
    %1013 = vmatpush1.msra.mxu0 0.0
    %1014 = vmatprep.subr.mxu0 0.0
    %1015 = vmatpush1.msra.mxu0 0.0
    %1016 = vmatprep.subr.mxu0 0.0
    %1017 = vmatpush1.msra.mxu0 0.0
    %1018 = vmatprep.subr.mxu0 0.0
    %1019 = vmatpush1.msra.mxu0 0.0
    %1020 = vmatprep.subr.mxu0 0.0
    %1021 = vmatpush1.msra.mxu0 0.0
    %1022 = vmatprep.subr.mxu0 0.0
    %1023 = vmatpush1.msra.mxu0 0.0
    %1024 = vmatprep.subr.mxu0 0.0
    %1025 = vmatpush1.msra.mxu0 0.0
    %1026 = vmatprep.subr.mxu0 0.0
    %1027 = vmatpush1.msra.mxu0 0.0
    %1028 = vmatprep.subr.mxu0 0.0
    %1029 = vmatpush1.msra.mxu0 0.0
    %1030 = vmatprep.subr.mxu0 0.0
    %1031 = vmatpush1.msra.mxu0 0.0
    %1032 = vmatprep.subr.mxu0 0.0
    %1033 = vmatpush1.msra.mxu0 0.0
    %1034 = vmatprep.subr.mxu0 0.0
    %1035 = vmatpush1.msra.mxu0 0.0
    %1036 = vmatprep.subr.mxu0 0.0
    %1037 = vmatpush1.msra.mxu0 0.0
    %1038 = vmatprep.subr.mxu0 0.0
    %1039 = vmatpush1.msra.mxu0 0.0
    %1040 = vmatprep.mubr.f32.mxu0 0.0
    %1041 = vmatmul.mubr.f32.gmra.mrb[0].mxu0 %v974
    %v1042 = vpop.f32.mrb[0].mxu0
    %v1043 = vadd.f32 %v967, %v1042
    %v1044 = vpop.f32.mrb[0].mxu0
    %1045 = vdwg.mxu0
    %v1046 = vld [vmem:[%s6] sm:$0x1]
    %v1048 = vlaneseq
    %v1049 = vshrl.u32 %v1048, 7
    %v1050 = vsub.s32 0, %v1049
    %v1051 = vrot.slane %v1046, %v1050
    %v1053 = vadd.f32 %v1043, %v1051
    %vm1054 = vcmask 58368
    %1055 = vst.msk [vmem:[#allocation2] sm:$0x3] %vm1054, %v1053
    // Predicated region
    $region30: #{meta_model_forward.1} parent=1 // pred_check
      _
    $region31: #{meta_model_forward.1} parent=1 // pred_check_branch
      %1057 = sbr.rel (0) target = $region33
    $region32: #{meta_model_forward.1} parent=1 // pred_region
      %s1059 = ssub.s32 32, 32
      %1060 = vsyncadd [#allocation3], %s1059
      %s1062 = sshll.u32 [#allocation2], 4
      %s1063 = int_to_ptr.vmem [resolvable:$true] %s1062
      %1065 = dma.vmem_to_hbm [thread:$0]  %s1063, 32, %s7, [#allocation3]
    $region33: #{meta_model_forward.1} parent=1 // pred_fallthru
      _
    // Predicated region
    $region34: #{meta_model_forward.1} parent=1 // pred_check
      _
    $region35: #{meta_model_forward.1} parent=1 // pred_check_branch
      %1067 = sbr.rel (0) target = $region37
    $region36: #{meta_model_forward.1} parent=1 // pred_region
      %1068 = dma.done [#allocation3], 32
    $region37: #{meta_model_forward.1} parent=1 // pred_fallthru
      _
    %1069 = vsyncpa [#allocation3], 1

</llo_original>
